<compile_context>
chip_gen: v7x
topology: tpu7x:2x2x1
jax: 0.10.0
libtpu: 0.0.40
codegen_flags: <defaults>
</compile_context>

<pallas_src>
import numpy as np
import jax
import jax.numpy as jnp
from jax.experimental import pallas as pl
from jax.experimental.pallas import tpu as pltpu

_LANES = 128
_MAX_BATCH_TILE = 512


def _round_up(x, m):
    return ((x + m - 1) // m) * m


def mlp_kernel(obs_ref, w12_ref, b12_ref, w3_ref, b3_ref, out_ref):
    x = obs_ref[...]                       # (TB, D) f32
    d = x.shape[1]
    w12 = w12_ref[...]                     # (D, H)
    if d <= 16:
        # Tiny contraction dim: unrolled VPU broadcast-FMA, no MXU round trip.
        acc = b12_ref[...]                 # (1, H), broadcasts over TB rows
        for k in range(d):                 # static unroll (d is trace-time const)
            acc = acc + x[:, k:k + 1] * w12[k:k + 1, :]
    else:
        acc = jnp.dot(x, w12, preferred_element_type=jnp.float32) + b12_ref[...]
    h = jnp.maximum(acc, 0.0)              # ReLU (follows folded Linear1+Linear2)
    # Final Linear(32 -> 128-padded action dim): lane-dense MXU matmul + store.
    out = jnp.dot(h, w3_ref[...], preferred_element_type=jnp.float32) + b3_ref[...]
    out_ref[...] = out.astype(out_ref.dtype)


def pack_params(params, action_dim):
    """Fold Linear1/Linear2 into one Linear and lane-pad the final layer."""
    w1, b1, w2, b2, w3, b3 = params
    w12 = w1 @ w2                          # (D, H)
    b12 = b1 @ w2 + b2                     # (1, H)
    a_pad = _round_up(max(action_dim, 1), _LANES)
    w3p = jnp.zeros((w3.shape[0], a_pad), jnp.float32).at[:, :action_dim].set(w3)
    b3p = jnp.zeros((1, a_pad), jnp.float32).at[:, :action_dim].set(b3)
    return (w12, b12, w3p, b3p)


def example_net1_forward(obs, packed_params, action_dim, state=None):
    """Fused MLP forward.  obs: (B, ...) flattened to (B, D).  Returns (logits, state)."""
    w12, b12, w3p, b3p = packed_params
    obs = obs.reshape(obs.shape[0], -1).astype(jnp.float32)
    batch, state_dim = obs.shape
    a_pad = w3p.shape[1]

    # Batch tile: multiple of 8 (sublane-aligned), capped at 512 rows.
    tb = min(_MAX_BATCH_TILE, _round_up(batch, 8))
    bp = _round_up(batch, tb)
    if bp != batch:
        obs = jnp.pad(obs, ((0, bp - batch), (0, 0)))

    pinned = lambda shape: pl.BlockSpec(shape, lambda i: (0, 0))

    logits = pl.pallas_call(
        mlp_kernel,
        out_shape=jax.ShapeDtypeStruct((bp, a_pad), jnp.float32),
        grid=(bp // tb,),
        in_specs=[
            pl.BlockSpec((tb, state_dim), lambda i: (i, 0)),   # obs tiles over batch
            pinned(w12.shape), pinned(b12.shape),              # weights DMA'd once
            pinned(w3p.shape), pinned(b3p.shape),
        ],
        out_specs=pl.BlockSpec((tb, a_pad), lambda i: (i, 0)), # lane-dense output slab
        compiler_params=pltpu.CompilerParams(
            dimension_semantics=("parallel",)),                # v7x: 2 TCs share batch
    )(obs, w12, b12, w3p, b3p)

    return logits[:batch, :action_dim], state


def init_params(state_dim, hidden, action_dim, key):
    """Deterministic init mimicking torch.nn.Linear defaults (uniform +/- 1/sqrt(fan_in))."""
    ks = jax.random.split(key, 6)

    def lin(kw, kb, fan_in, fan_out):
        bound = 1.0 / np.sqrt(fan_in)
        w = jax.random.uniform(kw, (fan_in, fan_out), jnp.float32, -bound, bound)
        b = jax.random.uniform(kb, (1, fan_out), jnp.float32, -bound, bound)
        return w, b

    w1, b1 = lin(ks[0], ks[1], state_dim, hidden)
    w2, b2 = lin(ks[2], ks[3], hidden, hidden)
    w3, b3 = lin(ks[4], ks[5], hidden, action_dim)
    return (w1, b1, w2, b2, w3, b3)


def reference_forward(obs, params):
    """Unfolded 3-layer reference (matches the PyTorch module exactly)."""
    w1, b1, w2, b2, w3, b3 = params
    h = obs @ w1 + b1
    h = h @ w2 + b2
    h = jnp.maximum(h, 0.0)
    return h @ w3 + b3


if __name__ == "__main__":
    key = jax.random.PRNGKey(0)
    k_obs, k_params, k_obs2 = jax.random.split(key, 3)

    state_shape = (4,)       # e.g. CartPole-like observation
    action_shape = (2,)
    batch = 8
    hidden = 32

    state_dim = int(np.prod(state_shape))
    action_dim = int(np.prod(action_shape))

    obs = jax.random.normal(k_obs, (batch, state_dim), jnp.float32)
    params = init_params(state_dim, hidden, action_dim, k_params)
    packed = pack_params(params, action_dim)

    # Small batch (single grid step).
    logits, state = example_net1_forward(obs, packed, action_dim)
    logits = jax.block_until_ready(logits)
    ref = reference_forward(obs, params)
    np.testing.assert_allclose(np.asarray(logits), np.asarray(ref),
                               rtol=1e-4, atol=1e-5)
    assert state is None

    # Larger batch: exercises >1 grid tile + row padding path.
    obs2 = jax.random.normal(k_obs2, (600, state_dim), jnp.float32)
    logits2, _ = example_net1_forward(obs2, packed, action_dim)
    logits2 = jax.block_until_ready(logits2)
    ref2 = reference_forward(obs2, params)
    np.testing.assert_allclose(np.asarray(logits2), np.asarray(ref2),
                               rtol=1e-4, atol=1e-5)

    print("KERNEL_OK")
</pallas_src>

<mosaic_0001>
module attributes {stable_mosaic.version = 11 : i64} {
  func.func @mlp_kernel(%arg0: i32, %arg1: memref<8x4xf32, #tpu.memory_space<vmem>>, %arg2: memref<4x32xf32, #tpu.memory_space<vmem>>, %arg3: memref<1x32xf32, #tpu.memory_space<vmem>>, %arg4: memref<32x128xf32, #tpu.memory_space<vmem>>, %arg5: memref<1x128xf32, #tpu.memory_space<vmem>>, %arg6: memref<8x128xf32, #tpu.memory_space<vmem>>) attributes {dimension_semantics = [#tpu.dimension_semantics<parallel>], iteration_bounds = array<i64: 1>, scalar_prefetch = 0 : i64, scratch_operands = 0 : i64, tpu.core_type = #tpu.core_type<tc>, window_params = [{transform_indices = @transform_0, window_bounds = array<i64: 8, 4>}, {pipeline_mode = #tpu.pipeline_mode<synchronous>, transform_indices = @transform_1, window_bounds = array<i64: 4, 32>}, {pipeline_mode = #tpu.pipeline_mode<synchronous>, transform_indices = @transform_2, window_bounds = array<i64: 1, 32>}, {pipeline_mode = #tpu.pipeline_mode<synchronous>, transform_indices = @transform_3, window_bounds = array<i64: 32, 128>}, {pipeline_mode = #tpu.pipeline_mode<synchronous>, transform_indices = @transform_4, window_bounds = array<i64: 1, 128>}, {transform_indices = @transform_5, window_bounds = array<i64: 8, 128>}]} {
    %c0 = arith.constant 0 : index
    %c0_0 = arith.constant 0 : index
    %0 = vector.load %arg1[%c0, %c0_0] : memref<8x4xf32, #tpu.memory_space<vmem>>, vector<8x4xf32>
    %c0_1 = arith.constant 0 : index
    %c0_2 = arith.constant 0 : index
    %1 = vector.load %arg2[%c0_1, %c0_2] : memref<4x32xf32, #tpu.memory_space<vmem>>, vector<4x32xf32>
    %c0_3 = arith.constant 0 : index
    %c0_4 = arith.constant 0 : index
    %2 = vector.load %arg3[%c0_3, %c0_4] : memref<1x32xf32, #tpu.memory_space<vmem>>, vector<1x32xf32>
    %3 = vector.extract_strided_slice %0 {offsets = [0, 0], sizes = [8, 1], strides = [1, 1]} : vector<8x4xf32> to vector<8x1xf32>
    %4 = vector.extract_strided_slice %1 {offsets = [0, 0], sizes = [1, 32], strides = [1, 1]} : vector<4x32xf32> to vector<1x32xf32>
    %5 = vector.broadcast %3 : vector<8x1xf32> to vector<8x32xf32>
    %6 = vector.broadcast %4 : vector<1x32xf32> to vector<8x32xf32>
    %7 = arith.mulf %5, %6 : vector<8x32xf32>
    %8 = vector.broadcast %2 : vector<1x32xf32> to vector<8x32xf32>
    %9 = arith.addf %8, %7 : vector<8x32xf32>
    %10 = vector.extract_strided_slice %0 {offsets = [0, 1], sizes = [8, 1], strides = [1, 1]} : vector<8x4xf32> to vector<8x1xf32>
    %11 = vector.extract_strided_slice %1 {offsets = [1, 0], sizes = [1, 32], strides = [1, 1]} : vector<4x32xf32> to vector<1x32xf32>
    %12 = vector.broadcast %10 : vector<8x1xf32> to vector<8x32xf32>
    %13 = vector.broadcast %11 : vector<1x32xf32> to vector<8x32xf32>
    %14 = arith.mulf %12, %13 : vector<8x32xf32>
    %15 = arith.addf %9, %14 : vector<8x32xf32>
    %16 = vector.extract_strided_slice %0 {offsets = [0, 2], sizes = [8, 1], strides = [1, 1]} : vector<8x4xf32> to vector<8x1xf32>
    %17 = vector.extract_strided_slice %1 {offsets = [2, 0], sizes = [1, 32], strides = [1, 1]} : vector<4x32xf32> to vector<1x32xf32>
    %18 = vector.broadcast %16 : vector<8x1xf32> to vector<8x32xf32>
    %19 = vector.broadcast %17 : vector<1x32xf32> to vector<8x32xf32>
    %20 = arith.mulf %18, %19 : vector<8x32xf32>
    %21 = arith.addf %15, %20 : vector<8x32xf32>
    %22 = vector.extract_strided_slice %0 {offsets = [0, 3], sizes = [8, 1], strides = [1, 1]} : vector<8x4xf32> to vector<8x1xf32>
    %23 = vector.extract_strided_slice %1 {offsets = [3, 0], sizes = [1, 32], strides = [1, 1]} : vector<4x32xf32> to vector<1x32xf32>
    %24 = vector.broadcast %22 : vector<8x1xf32> to vector<8x32xf32>
    %25 = vector.broadcast %23 : vector<1x32xf32> to vector<8x32xf32>
    %26 = arith.mulf %24, %25 : vector<8x32xf32>
    %27 = arith.addf %21, %26 : vector<8x32xf32>
    %cst = arith.constant 0.000000e+00 : f32
    %28 = vector.broadcast %cst : f32 to vector<8x32xf32>
    %29 = arith.maximumf %27, %28 : vector<8x32xf32>
    %c0_5 = arith.constant 0 : index
    %c0_6 = arith.constant 0 : index
    %30 = vector.load %arg4[%c0_5, %c0_6] : memref<32x128xf32, #tpu.memory_space<vmem>>, vector<32x128xf32>
    %cst_7 = arith.constant dense<0.000000e+00> : vector<8x128xf32>
    %31 = tpu.matmul %29, %30, %cst_7 {dimension_numbers = #tpu.dot_dimension_numbers<[1], [0], [0], [1], [0, 0, 1, 1], [], []>} : vector<8x32xf32>, vector<32x128xf32>, vector<8x128xf32> -> vector<8x128xf32>
    %c0_8 = arith.constant 0 : index
    %c0_9 = arith.constant 0 : index
    %32 = vector.load %arg5[%c0_8, %c0_9] : memref<1x128xf32, #tpu.memory_space<vmem>>, vector<1x128xf32>
    %33 = vector.broadcast %32 : vector<1x128xf32> to vector<8x128xf32>
    %34 = arith.addf %31, %33 : vector<8x128xf32>
    %c0_10 = arith.constant 0 : index
    %c0_11 = arith.constant 0 : index
    %35 = vector.load %arg6[%c0_10, %c0_11] : memref<8x128xf32, #tpu.memory_space<vmem>>, vector<8x128xf32>
    tpu.vector_store %arg6[%c0_10, %c0_11], %34 {strides = array<i32>} : memref<8x128xf32, #tpu.memory_space<vmem>>, vector<8x128xf32>,
    return
  }
  func.func @transform_0(%arg0: i32) -> (i32, i32) {
    %c0_i32 = arith.constant 0 : i32
    %c0_i32_0 = arith.constant 0 : i32
    return %arg0, %c0_i32 : i32, i32
  }
  func.func @transform_1(%arg0: i32) -> (i32, i32) {
    %c0_i32 = arith.constant 0 : i32
    %c0_i32_0 = arith.constant 0 : i32
    %c0_i32_1 = arith.constant 0 : i32
    return %c0_i32, %c0_i32_0 : i32, i32
  }
  func.func @transform_2(%arg0: i32) -> (i32, i32) {
    %c0_i32 = arith.constant 0 : i32
    %c0_i32_0 = arith.constant 0 : i32
    %c0_i32_1 = arith.constant 0 : i32
    return %c0_i32, %c0_i32_0 : i32, i32
  }
  func.func @transform_3(%arg0: i32) -> (i32, i32) {
    %c0_i32 = arith.constant 0 : i32
    %c0_i32_0 = arith.constant 0 : i32
    %c0_i32_1 = arith.constant 0 : i32
    return %c0_i32, %c0_i32_0 : i32, i32
  }
  func.func @transform_4(%arg0: i32) -> (i32, i32) {
    %c0_i32 = arith.constant 0 : i32
    %c0_i32_0 = arith.constant 0 : i32
    %c0_i32_1 = arith.constant 0 : i32
    return %c0_i32, %c0_i32_0 : i32, i32
  }
  func.func @transform_5(%arg0: i32) -> (i32, i32) {
    %c0_i32 = arith.constant 0 : i32
    %c0_i32_0 = arith.constant 0 : i32
    return %arg0, %c0_i32 : i32, i32
  }
}

</mosaic_0001>

<llo_original>
// kernel: tpu_custom_call.1
$region0: #{tpu_custom_call.1}
  #allocation0 [shape = 'u32[]', space=smem, size = 0x4, offset = 0x4, fixed_abs, tag = 'smem constant byte address 0x4 - core index']
  #allocation1 [shape = 'u32[144,128]{1,0:T(1,128)}', space=vmem, size = 0x12000, scoped, tag = 'internal scratch']
  %s0 = inlined_call_operand.vmem [shape: f32[8,4], index: 0, kind: input, shape index: {}]
  %s1 = inlined_call_operand.vmem [shape: f32[4,32], index: 1, kind: input, shape index: {}]
  %s2 = inlined_call_operand.vmem [shape: f32[1,32], index: 2, kind: input, shape index: {}]
  %s3 = inlined_call_operand.hbm [shape: f32[32,128], index: 3, kind: input, shape index: {}]
  %s4 = inlined_call_operand.vmem [shape: f32[1,128], index: 4, kind: input, shape index: {}]
  %s5 = inlined_call_operand.hbm [shape: f32[8,128], index: 5, kind: output, shape index: {}]
  %s6 = sld [smem:[#allocation0]]
  $region34: #{tpu_custom_call.1} parent=0
    _
  %s8 = ssub.s32 1, %s6
  %s9 = scalar_select 0, %s8, %s6
  $region1: #{tpu_custom_call.1} parent=0
    #allocation2 [shape = 'u8[16384]{0}', space=vmem, size = 0x4000, scoped, tag = 'input window, operand 3, single buffered']
    #allocation3 [shape = 's32[1]{0}', space=sflag, size = 0x4, scoped, tag = 'scoped memory for tpu_custom_call.1']
    #allocation4 [shape = 's32[1]{0}', space=sflag, size = 0x4, scoped, tag = 'scoped memory for tpu_custom_call.1']
    #allocation5 [shape = 'u8[4096]{0}', space=vmem, size = 0x1000, scoped, tag = 'output window, operand 0, single buffered']
    %10 = vsyncpa [#allocation3], 0
    %11 = vsyncpa [#allocation4], 0
    // Predicated region
    $region2: #{tpu_custom_call.1} parent=1 // pred_check
      _
    $region3: #{tpu_custom_call.1} parent=1 // pred_check_branch
      %13 = sbr.rel (0) target = $region5
    $region4: #{tpu_custom_call.1} parent=1 // pred_region
      _
    $region5: #{tpu_custom_call.1} parent=1 // pred_fallthru
      _
    // Predicated region
    $region6: #{tpu_custom_call.1} parent=1 // pred_check
      _
    $region7: #{tpu_custom_call.1} parent=1 // pred_check_branch
      %15 = sbr.rel (0) target = $region9
    $region8: #{tpu_custom_call.1} parent=1 // pred_region
      _
    $region9: #{tpu_custom_call.1} parent=1 // pred_fallthru
      _
    // Predicated region
    $region10: #{tpu_custom_call.1} parent=1 // pred_check
      _
    $region11: #{tpu_custom_call.1} parent=1 // pred_check_branch
      %17 = sbr.rel (0) target = $region13
    $region12: #{tpu_custom_call.1} parent=1 // pred_region
      _
    $region13: #{tpu_custom_call.1} parent=1 // pred_fallthru
      _
    // Predicated region
    $region14: #{tpu_custom_call.1} parent=1 // pred_check
      _
    $region15: #{tpu_custom_call.1} parent=1 // pred_check_branch
      %19 = sbr.rel (0) target = $region17
    $region16: #{tpu_custom_call.1} parent=1 // pred_region
      %s21 = ssub.s32 512, 512
      %22 = vsyncadd [#allocation3], %s21
      %s23 = sshll.u32 [#allocation2], 4
      %s24 = int_to_ptr.vmem [resolvable:$true] %s23
      %29 = dma.hbm_to_vmem [thread:$0]  %s3, 512, %s24, [#allocation3], 128, 128, 8
    $region17: #{tpu_custom_call.1} parent=1 // pred_fallthru
      _
    // Predicated region
    $region18: #{tpu_custom_call.1} parent=1 // pred_check
      _
    $region19: #{tpu_custom_call.1} parent=1 // pred_check_branch
      %31 = sbr.rel (0) target = $region21
    $region20: #{tpu_custom_call.1} parent=1 // pred_region
      _
    $region21: #{tpu_custom_call.1} parent=1 // pred_fallthru
      _
    // Predicated region
    $region22: #{tpu_custom_call.1} parent=1 // pred_check
      _
    $region23: #{tpu_custom_call.1} parent=1 // pred_check_branch
      %33 = sbr.rel (0) target = $region25
    $region24: #{tpu_custom_call.1} parent=1 // pred_region
      %34 = dma.done [#allocation3], 512
    $region25: #{tpu_custom_call.1} parent=1 // pred_fallthru
      _
    %v35 = vld [vmem:[%s0] sm:$0xff]
    %v36 = vld [vmem:[%s1] sm:$0xf]
    %v37 = vld [vmem:[%s2] sm:$0x1]
    %39 = vset.pattern.permute.xlu0 0
    %40 = vperm.xlu0 %39, %v35
    %v41 = vpop.permute.xlu0 %40
    %v43 = vlaneseq
    %v44 = vshrl.u32 %v43, 7
    %v45 = vsub.s32 0, %v44
    %v46 = vrot.slane %v36, %v45
    %v47 = vmul.f32 %v41, %v46
    %v49 = vlaneseq
    %v50 = vshrl.u32 %v49, 7
    %v51 = vsub.s32 0, %v50
    %v52 = vrot.slane %v37, %v51
    %v54 = vadd.f32 %v52, %v47
    %55 = vset.pattern.permute.xlu0 1
    %56 = vperm.xlu0 %55, %v35
    %v57 = vpop.permute.xlu0 %56
    %v59 = vlaneseq
    %v60 = vshrl.u32 %v59, 7
    %v61 = vsub.s32 1, %v60
    %v62 = vrot.slane %v36, %v61
    %v63 = vmul.f32 %v57, %v62
    %v64 = vadd.f32 %v54, %v63
    %65 = vset.pattern.permute.xlu0 2
    %66 = vperm.xlu0 %65, %v35
    %v67 = vpop.permute.xlu0 %66
    %v69 = vlaneseq
    %v70 = vshrl.u32 %v69, 7
    %v71 = vsub.s32 2, %v70
    %v72 = vrot.slane %v36, %v71
    %v73 = vmul.f32 %v67, %v72
    %v74 = vadd.f32 %v64, %v73
    %75 = vset.pattern.permute.xlu0 3
    %76 = vperm.xlu0 %75, %v35
    %v77 = vpop.permute.xlu0 %76
    %v79 = vlaneseq
    %v80 = vshrl.u32 %v79, 7
    %v81 = vsub.s32 3, %v80
    %v82 = vrot.slane %v36, %v81
    %v83 = vmul.f32 %v77, %v82
    %v84 = vadd.f32 %v74, %v83
    %v85 = vmax.f32 %v84, 0.0
    %v86 = vld [vmem:[#allocation2] sm:$0xff]
    %v87 = vld [vmem:[#allocation2 + $0x8] sm:$0xff]
    %v88 = vld [vmem:[#allocation2 + $0x10] sm:$0xff]
    %v89 = vld [vmem:[#allocation2 + $0x18] sm:$0xff]
    %v90 = vld [vmem:[%s4] sm:$0x1]
    %v92 = vlaneseq
    %v93 = vshrl.u32 %v92, 7
    %v94 = vsub.s32 0, %v93
    %v95 = vrot.slane %v90, %v94
    %vm97 = vcmask 261120
    %v99 = vsel %vm97, %v85, 0
    %101 = vmatprep.subr.mxu0 0.0
    %102 = vmatpush1.msra.mxu0 %v86
    %103 = vmatprep.subr.mxu0 0.0
    %104 = vmatpush1.msra.mxu0 %v87
    %105 = vmatprep.subr.mxu0 0.0
    %106 = vmatpush1.msra.mxu0 %v88
    %107 = vmatprep.subr.mxu0 0.0
    %108 = vmatpush1.msra.mxu0 %v89
    %109 = vmatprep.subr.mxu0 0.0
    %110 = vmatpush1.msra.mxu0 0.0
    %111 = vmatprep.subr.mxu0 0.0
    %112 = vmatpush1.msra.mxu0 0.0
    %113 = vmatprep.subr.mxu0 0.0
    %114 = vmatpush1.msra.mxu0 0.0
    %115 = vmatprep.subr.mxu0 0.0
    %116 = vmatpush1.msra.mxu0 0.0
    %117 = vmatprep.subr.mxu0 0.0
    %118 = vmatpush1.msra.mxu0 0.0
    %119 = vmatprep.subr.mxu0 0.0
    %120 = vmatpush1.msra.mxu0 0.0
    %121 = vmatprep.subr.mxu0 0.0
    %122 = vmatpush1.msra.mxu0 0.0
    %123 = vmatprep.subr.mxu0 0.0
    %124 = vmatpush1.msra.mxu0 0.0
    %125 = vmatprep.subr.mxu0 0.0
    %126 = vmatpush1.msra.mxu0 0.0
    %127 = vmatprep.subr.mxu0 0.0
    %128 = vmatpush1.msra.mxu0 0.0
    %129 = vmatprep.subr.mxu0 0.0
    %130 = vmatpush1.msra.mxu0 0.0
    %131 = vmatprep.subr.mxu0 0.0
    %132 = vmatpush1.msra.mxu0 0.0
    %133 = vmatprep.subr.mxu0 0.0
    %134 = vmatpush1.msra.mxu0 0.0
    %135 = vmatprep.subr.mxu0 0.0
    %136 = vmatpush1.msra.mxu0 0.0
    %137 = vmatprep.subr.mxu0 0.0
    %138 = vmatpush1.msra.mxu0 0.0
    %139 = vmatprep.subr.mxu0 0.0
    %140 = vmatpush1.msra.mxu0 0.0
    %141 = vmatprep.subr.mxu0 0.0
    %142 = vmatpush1.msra.mxu0 0.0
    %143 = vmatprep.subr.mxu0 0.0
    %144 = vmatpush1.msra.mxu0 0.0
    %145 = vmatprep.subr.mxu0 0.0
    %146 = vmatpush1.msra.mxu0 0.0
    %147 = vmatprep.subr.mxu0 0.0
    %148 = vmatpush1.msra.mxu0 0.0
    %149 = vmatprep.subr.mxu0 0.0
    %150 = vmatpush1.msra.mxu0 0.0
    %151 = vmatprep.subr.mxu0 0.0
    %152 = vmatpush1.msra.mxu0 0.0
    %153 = vmatprep.subr.mxu0 0.0
    %154 = vmatpush1.msra.mxu0 0.0
    %155 = vmatprep.subr.mxu0 0.0
    %156 = vmatpush1.msra.mxu0 0.0
    %157 = vmatprep.subr.mxu0 0.0
    %158 = vmatpush1.msra.mxu0 0.0
    %159 = vmatprep.subr.mxu0 0.0
    %160 = vmatpush1.msra.mxu0 0.0
    %161 = vmatprep.subr.mxu0 0.0
    %162 = vmatpush1.msra.mxu0 0.0
    %163 = vmatprep.subr.mxu0 0.0
    %164 = vmatpush1.msra.mxu0 0.0
    %165 = vmatprep.mubr.f32.mxu0 0.0
    %166 = vmatmul.mubr.f32.gmra.mrb[0].mxu0 %v99
    %v167 = vpop.f32.mrb[0].mxu0
    %v168 = vadd.f32 %v95, %v167
    %v169 = vpop.f32.mrb[0].mxu0
    %170 = vdwg.mxu0
    %171 = vst [vmem:[#allocation5] sm:$0xff] %v168
    // Predicated region
    $region26: #{tpu_custom_call.1} parent=1 // pred_check
      _
    $region27: #{tpu_custom_call.1} parent=1 // pred_check_branch
      %173 = sbr.rel (0) target = $region29
    $region28: #{tpu_custom_call.1} parent=1 // pred_region
      %s175 = ssub.s32 128, 128
      %176 = vsyncadd [#allocation4], %s175
      %s178 = sshll.u32 [#allocation5], 4
      %s179 = int_to_ptr.vmem [resolvable:$true] %s178
      %181 = dma.vmem_to_hbm [thread:$0]  %s179, 128, %s5, [#allocation4]
    $region29: #{tpu_custom_call.1} parent=1 // pred_fallthru
      _
    // Predicated region
    $region30: #{tpu_custom_call.1} parent=1 // pred_check
      _
    $region31: #{tpu_custom_call.1} parent=1 // pred_check_branch
      %183 = sbr.rel (0) target = $region33
    $region32: #{tpu_custom_call.1} parent=1 // pred_region
      %184 = dma.done [#allocation4], 128
    $region33: #{tpu_custom_call.1} parent=1 // pred_fallthru
      _
    %185 = vsyncpa [#allocation3], 1
    %186 = vsyncpa [#allocation4], 1

</llo_original>
